<compile_context>
chip_gen: v5e
topology: v5e:2x2
jax: 0.10.0
libtpu: 0.0.40
codegen_flags: <defaults>
</compile_context>

<pallas_src>
import functools

import jax
import jax.numpy as jnp
from jax import lax
from jax.experimental import pallas as pl
from jax.experimental.pallas import tpu as pltpu

_EPS = 1e-6                             # F.pairwise_distance default eps
_FALLBACK_ELEMS = 512 * 1024            # below this, a single fused XLA op wins
_TILE_BYTES_TARGET = 4 * 1024 * 1024    # ~4 MiB per input tile per grid step
_MAX_BLOCK_ROWS = 4096                  # keeps lane-padded (tb,1) temps small
_VMEM_BUDGET = 40 * 1024 * 1024         # our resident-VMEM estimate must fit here
_VMEM_LIMIT = 48 * 1024 * 1024          # scoped-VMEM limit (< v7x 64 MiB physical)


def _contrastive_loss_ref(output1, output2, label, margin=1.0):
    """Pure-JAX reference mirroring the PyTorch forward (also tiny-size path)."""
    o1 = jnp.asarray(output1, jnp.float32)
    o2 = jnp.asarray(output2, jnp.float32)
    d = jnp.sqrt(jnp.sum((o1 - o2 + _EPS) ** 2, axis=-1))
    lbl = jnp.asarray(label, jnp.float32).reshape(d.shape)
    return jnp.mean((1.0 - lbl) * d ** 2
                    + lbl * jnp.maximum(margin - d, 0.0) ** 2)


def _vmem_estimate(tb, td, elem):
    """Resident VMEM estimate for one grid step (conservative)."""
    inputs = 2 * 2 * tb * td * elem      # output1/output2, double-buffered
    interm = 3 * tb * td * 4             # f32 elementwise temporaries allowance
    label = 2 * tb * 128 * 4             # (tb,1) f32 label block, lane-padded
    scratch = tb * 128 * 4               # (tb,1) f32 d2 accumulator, lane-padded
    return inputs + interm + label + scratch


def _contrastive_loss_kernel(x1_ref, x2_ref, lbl_ref, out_ref, d2_acc, *,
                             margin, batch, tile_b, feat, tile_d):
    """Grid (batch_tile i: parallel, feature_tile j: arbitrary/reduction).

    Accumulates the row-wise squared distance over feature tiles, then on the
    last feature tile combines with the label and writes one scalar partial
    sum per batch tile to SMEM (no lane-sparse masked stores).
    """
    i = pl.program_id(0)
    j = pl.program_id(1)

    @pl.when(j == 0)
    def _():
        d2_acc[...] = jnp.zeros_like(d2_acc)

    # Inputs stream in native dtype; upcast to f32 here (v5e has no bf16 VPU,
    # so keep the math f32 on every generation).
    diff = (x1_ref[...].astype(jnp.float32)
            - x2_ref[...].astype(jnp.float32) + _EPS)              # (tb, td)
    if feat % tile_d != 0:
        # Mask padded feature columns of the last feature tile.
        col = j * tile_d + lax.broadcasted_iota(jnp.int32, diff.shape, 1)
        diff = jnp.where(col < feat, diff, 0.0)
    d2_acc[...] += jnp.sum(diff * diff, axis=-1, keepdims=True)    # (tb, 1)

    @pl.when(j == pl.num_programs(1) - 1)
    def _():
        d2 = d2_acc[...]                                           # (tb, 1)
        d = jnp.sqrt(d2)
        lbl = lbl_ref[...]                                         # (tb, 1)
        hinge = jnp.maximum(margin - d, 0.0)                       # clamp(min=0)
        # Use d2 directly for the similar-pair term (no redundant d*d).
        per_row = (1.0 - lbl) * d2 + lbl * (hinge * hinge)
        # Mask padded tail rows (select, not multiply: garbage rows may be NaN).
        row = i * tile_b + lax.broadcasted_iota(jnp.int32, per_row.shape, 0)
        per_row = jnp.where(row < batch, per_row, 0.0)
        out_ref[0, 0] = jnp.sum(per_row)                           # SMEM scalar


def contrastive_loss(output1, output2, label, margin=1.0, *,
                     block_rows=None, block_cols=None, force_kernel=False):
    """output1, output2: (B, D); label: (B,) or (B, 1). Returns scalar loss."""
    output1 = jnp.asarray(output1)
    output2 = jnp.asarray(output2)
    if output1.dtype != output2.dtype:
        common = jnp.promote_types(output1.dtype, output2.dtype)
        output1 = output1.astype(common)
        output2 = output2.astype(common)
    B, D = output1.shape
    label = jnp.asarray(label, jnp.float32).reshape(B, 1)

    # Tiny problems: the kernel would be pure launch / grid-step overhead.
    if not force_kernel and B * D < _FALLBACK_ELEMS:
        return _contrastive_loss_ref(output1, output2, label, margin)

    elem = jnp.dtype(output1.dtype).itemsize
    sub = max(8, 32 // elem)    # sublane multiple: 8 (f32), 16 (bf16/f16), 32 (i8)

    # ---- feature (lane) tile ------------------------------------------------
    if block_cols is not None:
        bc = int(block_cols)
        td = D if bc >= D else max(128, (bc // 128) * 128)
        td = D if td >= D else td
    elif sub * D * elem <= 2 * _TILE_BYTES_TARGET:
        td = D                                   # usual case: full row width
    else:
        # Very wide rows: tile the feature axis (multiple of 128 lanes) and
        # accumulate the row-wise squared norm across feature tiles.
        td = max(128, min(D, (_TILE_BYTES_TARGET // (sub * elem)) // 128 * 128))
    num_d = pl.cdiv(D, td)

    # ---- batch (sublane) tile -----------------------------------------------
    if block_rows is None:
        tb = (_TILE_BYTES_TARGET // (elem * td)) // sub * sub
        tb = max(sub, min(tb, _MAX_BLOCK_ROWS))
    else:
        tb = max(sub, (int(block_rows) // sub) * sub)
    if tb >= B:
        tb = B                      # single full-array block (always legal)
        if B >= 2 * sub:
            # Keep >= 2 batch tiles so both v7x TensorCores get grid steps.
            tb = max(sub, (-(-B // 2) + sub - 1) // sub * sub)
    # Shrink until the (conservative) VMEM estimate fits the budget.
    while tb > sub and _vmem_estimate(tb, td, elem) > _VMEM_BUDGET:
        tb = max(sub, ((tb // 2) // sub) * sub)
    num_b = pl.cdiv(B, tb)

    kernel = functools.partial(_contrastive_loss_kernel, margin=float(margin),
                               batch=B, tile_b=tb, feat=D, tile_d=td)

    partials = pl.pallas_call(
        kernel,
        out_shape=jax.ShapeDtypeStruct((num_b, 1), jnp.float32),
        grid=(num_b, num_d),
        in_specs=[
            pl.BlockSpec((tb, td), lambda i, j: (i, j)),
            pl.BlockSpec((tb, td), lambda i, j: (i, j)),
            pl.BlockSpec((tb, 1), lambda i, j: (i, 0)),
        ],
        # Per-batch-tile scalar partial sum in SMEM: no lane-sparse masked
        # VMEM stores, and independent output blocks along the batch axis keep
        # it "parallel" (both TensorCores on v7x; neutral on v5e/v6e).
        out_specs=pl.BlockSpec((1, 1), lambda i, j: (i, 0),
                               memory_space=pltpu.MemorySpace.SMEM),
        scratch_shapes=[pltpu.VMEM((tb, 1), jnp.float32)],
        compiler_params=pltpu.CompilerParams(
            dimension_semantics=("parallel", "arbitrary"),
            vmem_limit_bytes=_VMEM_LIMIT,
        ),
    )(output1, output2, label)

    # Epilogue: combine partial sums and divide by the true batch size once.
    return jnp.sum(partials) / jnp.float32(B)


if __name__ == "__main__":
    key = jax.random.PRNGKey(0)
    ks = jax.random.split(key, 9)

    # Case 1: tiny single-tile f32 case (block == full array).
    B1, D1 = 8, 32
    o1 = jax.random.normal(ks[0], (B1, D1), dtype=jnp.float32)
    o2 = jax.random.normal(ks[1], (B1, D1), dtype=jnp.float32)
    l1 = jax.random.bernoulli(ks[2], 0.5, (B1,)).astype(jnp.float32)
    out1 = jax.block_until_ready(
        contrastive_loss(o1, o2, l1, margin=1.0, force_kernel=True))
    ref1 = _contrastive_loss_ref(o1, o2, l1, margin=1.0)
    assert jnp.allclose(out1, ref1, rtol=1e-5, atol=1e-5), (out1, ref1)

    # Case 2: multi batch-tile f32 grid with masked tail rows (B % tb != 0),
    # exercising SMEM partial sums + the "parallel" batch axis.
    B2, D2 = 40, 128
    p1 = jax.random.normal(ks[3], (B2, D2), dtype=jnp.float32)
    p2 = jax.random.normal(ks[4], (B2, D2), dtype=jnp.float32)
    l2 = jax.random.bernoulli(ks[5], 0.5, (B2,)).astype(jnp.float32)
    out2 = jax.block_until_ready(
        contrastive_loss(p1, p2, l2, margin=1.0, block_rows=16,
                         force_kernel=True))
    ref2 = _contrastive_loss_ref(p1, p2, l2, margin=1.0)
    assert jnp.allclose(out2, ref2, rtol=1e-5, atol=1e-5), (out2, ref2)

    # Case 3: bf16 inputs (no wrapper pre-cast; upcast happens in-kernel) with
    # a tiled feature axis, d2 accumulator, and a masked feature tail
    # (D % td != 0) plus a masked batch tail.
    B3, D3 = 24, 192
    q1 = jax.random.normal(ks[6], (B3, D3), dtype=jnp.float32).astype(jnp.bfloat16)
    q2 = jax.random.normal(ks[7], (B3, D3), dtype=jnp.float32).astype(jnp.bfloat16)
    l3 = jax.random.bernoulli(ks[8], 0.5, (B3,)).astype(jnp.float32)
    out3 = jax.block_until_ready(
        contrastive_loss(q1, q2, l3, margin=1.0, block_rows=8, block_cols=128,
                         force_kernel=True))
    ref3 = _contrastive_loss_ref(q1, q2, l3, margin=1.0)
    assert jnp.allclose(out3, ref3, rtol=1e-4, atol=1e-4), (out3, ref3)

    print("KERNEL_OK")
</pallas_src>

<mosaic_0001>
module attributes {stable_mosaic.version = 11 : i64} {
  func.func @_contrastive_loss_kernel(%arg0: i32, %arg1: i32, %arg2: memref<8x32xf32, #tpu.memory_space<vmem>>, %arg3: memref<8x32xf32, #tpu.memory_space<vmem>>, %arg4: memref<8x1xf32, #tpu.memory_space<vmem>>, %arg5: memref<1x1xf32, #tpu.memory_space<smem>>, %arg6: memref<8x1xf32, #tpu.memory_space<vmem>>) attributes {dimension_semantics = [#tpu.dimension_semantics<parallel>, #tpu.dimension_semantics<arbitrary>], iteration_bounds = array<i64: 1, 1>, scalar_prefetch = 0 : i64, scratch_operands = 1 : i64, tpu.core_type = #tpu.core_type<tc>, window_params = [{transform_indices = @transform_0, window_bounds = array<i64: 8, 32>}, {transform_indices = @transform_1, window_bounds = array<i64: 8, 32>}, {transform_indices = @transform_2, window_bounds = array<i64: 8, 1>}, {transform_indices = @transform_3, window_bounds = array<i64: 1, 1>}]} {
    %c0_i32 = arith.constant 0 : i32
    %0 = arith.cmpi eq, %arg1, %c0_i32 : i32
    %1 = arith.extui %0 : i1 to i32
    %c0_i32_0 = arith.constant 0 : i32
    %2 = arith.cmpi ne, %1, %c0_i32_0 : i32
    scf.if %2 {
      %cst_11 = arith.constant 0.000000e+00 : f32
      %17 = vector.broadcast %cst_11 : f32 to vector<8x1xf32>
      %c0_12 = arith.constant 0 : index
      %c0_13 = arith.constant 0 : index
      %18 = vector.load %arg6[%c0_12, %c0_13] : memref<8x1xf32, #tpu.memory_space<vmem>>, vector<8x1xf32>
      tpu.vector_store %arg6[%c0_12, %c0_13], %17 {strides = array<i32>} : memref<8x1xf32, #tpu.memory_space<vmem>>, vector<8x1xf32>,
    } else {
    }
    %c0 = arith.constant 0 : index
    %c0_1 = arith.constant 0 : index
    %3 = vector.load %arg2[%c0, %c0_1] : memref<8x32xf32, #tpu.memory_space<vmem>>, vector<8x32xf32>
    %c0_2 = arith.constant 0 : index
    %c0_3 = arith.constant 0 : index
    %4 = vector.load %arg3[%c0_2, %c0_3] : memref<8x32xf32, #tpu.memory_space<vmem>>, vector<8x32xf32>
    %5 = arith.subf %3, %4 : vector<8x32xf32>
    %cst = arith.constant 9.99999997E-7 : f32
    %6 = vector.broadcast %cst : f32 to vector<8x32xf32>
    %7 = arith.addf %5, %6 : vector<8x32xf32>
    %c0_4 = arith.constant 0 : index
    %c0_5 = arith.constant 0 : index
    %8 = vector.load %arg6[%c0_4, %c0_5] : memref<8x1xf32, #tpu.memory_space<vmem>>, vector<8x1xf32>
    %9 = arith.mulf %7, %7 : vector<8x32xf32>
    %cst_6 = arith.constant dense<0.000000e+00> : vector<8xf32>
    %10 = vector.multi_reduction <add>, %9, %cst_6 [1] : vector<8x32xf32> to vector<8xf32>
    %11 = vector.shape_cast %10 : vector<8xf32> to vector<8x1xf32>
    %12 = arith.addf %8, %11 : vector<8x1xf32>
    %c0_7 = arith.constant 0 : index
    %c0_8 = arith.constant 0 : index
    %13 = vector.load %arg6[%c0_7, %c0_8] : memref<8x1xf32, #tpu.memory_space<vmem>>, vector<8x1xf32>
    tpu.vector_store %arg6[%c0_7, %c0_8], %12 {strides = array<i32>} : memref<8x1xf32, #tpu.memory_space<vmem>>, vector<8x1xf32>,
    %c0_i32_9 = arith.constant 0 : i32
    %14 = arith.cmpi eq, %arg1, %c0_i32_9 : i32
    %15 = arith.extui %14 : i1 to i32
    %c0_i32_10 = arith.constant 0 : i32
    %16 = arith.cmpi ne, %15, %c0_i32_10 : i32
    scf.if %16 {
      %c0_11 = arith.constant 0 : index
      %c0_12 = arith.constant 0 : index
      %17 = vector.load %arg6[%c0_11, %c0_12] : memref<8x1xf32, #tpu.memory_space<vmem>>, vector<8x1xf32>
      %18 = math.sqrt %17 : vector<8x1xf32>
      %c0_13 = arith.constant 0 : index
      %c0_14 = arith.constant 0 : index
      %19 = vector.load %arg4[%c0_13, %c0_14] : memref<8x1xf32, #tpu.memory_space<vmem>>, vector<8x1xf32>
      %cst_15 = arith.constant 1.000000e+00 : f32
      %20 = vector.broadcast %cst_15 : f32 to vector<8x1xf32>
      %21 = arith.subf %20, %18 : vector<8x1xf32>
      %cst_16 = arith.constant 0.000000e+00 : f32
      %22 = vector.broadcast %cst_16 : f32 to vector<8x1xf32>
      %23 = arith.maximumf %21, %22 : vector<8x1xf32>
      %cst_17 = arith.constant 1.000000e+00 : f32
      %24 = vector.broadcast %cst_17 : f32 to vector<8x1xf32>
      %25 = arith.subf %24, %19 : vector<8x1xf32>
      %26 = arith.mulf %25, %17 : vector<8x1xf32>
      %27 = arith.mulf %23, %23 : vector<8x1xf32>
      %28 = arith.mulf %19, %27 : vector<8x1xf32>
      %29 = arith.addf %26, %28 : vector<8x1xf32>
      %c8_i32 = arith.constant 8 : i32
      %30 = arith.muli %arg0, %c8_i32 : i32
      %31 = tpu.iota {dimensions = array<i32: 0>} : vector<8x1xi32>
      %32 = vector.broadcast %30 : i32 to vector<8x1xi32>
      %33 = arith.addi %32, %31 : vector<8x1xi32>
      %c8_i32_18 = arith.constant 8 : i32
      %34 = vector.broadcast %c8_i32_18 : i32 to vector<8x1xi32>
      %35 = arith.cmpi slt, %33, %34 : vector<8x1xi32>
      %cst_19 = arith.constant 0.000000e+00 : f32
      %36 = vector.broadcast %cst_19 : f32 to vector<8x1xf32>
      %37 = arith.select %35, %29, %36 : vector<8x1xi1>, vector<8x1xf32>
      %38 = vector.shape_cast %37 : vector<8x1xf32> to vector<1x8x1xf32>
      %cst_20 = arith.constant dense<0.000000e+00> : vector<1xf32>
      %39 = vector.multi_reduction <add>, %38, %cst_20 [1, 2] : vector<1x8x1xf32> to vector<1xf32>
      %40 = vector.shape_cast %39 : vector<1xf32> to vector<1x1x1xf32>
      %41 = vector.extract %40[0, 0, 0] : f32 from vector<1x1x1xf32>
      %c0_21 = arith.constant 0 : index
      %c0_22 = arith.constant 0 : index
      %42 = memref.load %arg5[%c0_21, %c0_22] : memref<1x1xf32, #tpu.memory_space<smem>>
      memref.store %41, %arg5[%c0_21, %c0_22] : memref<1x1xf32, #tpu.memory_space<smem>>
    } else {
    }
    return
  }
  func.func @transform_0(%arg0: i32, %arg1: i32) -> (i32, i32) {
    %c0_i32 = arith.constant 0 : i32
    return %arg0, %arg1 : i32, i32
  }
  func.func @transform_1(%arg0: i32, %arg1: i32) -> (i32, i32) {
    %c0_i32 = arith.constant 0 : i32
    return %arg0, %arg1 : i32, i32
  }
  func.func @transform_2(%arg0: i32, %arg1: i32) -> (i32, i32) {
    %c0_i32 = arith.constant 0 : i32
    %c0_i32_0 = arith.constant 0 : i32
    return %arg0, %c0_i32 : i32, i32
  }
  func.func @transform_3(%arg0: i32, %arg1: i32) -> (i32, i32) {
    %c0_i32 = arith.constant 0 : i32
    %c0_i32_0 = arith.constant 0 : i32
    return %arg0, %c0_i32 : i32, i32
  }
}

</mosaic_0001>

<llo_original>
// kernel: tpu_custom_call.1
$region0: #{tpu_custom_call.1}
  #allocation0 [shape = 'u32[]', space=smem, size = 0x4, offset = 0x4, fixed_abs, tag = 'smem constant byte address 0x4 - core index']
  #allocation1 [shape = 'u32[72,128]{1,0:T(1,128)}', space=vmem, size = 0x9000, scoped, tag = 'internal scratch']
  #allocation2 [shape = 'f32[8,1]{1,0:T(8,128)}', space=vmem, size = 0x1000, scoped, tag = 'scratch operand']
  %s0 = inlined_call_operand.vmem [shape: f32[8,32], index: 0, kind: input, shape index: {}]
  %s1 = inlined_call_operand.hbm [shape: f32[8,32], index: 1, kind: input, shape index: {}]
  %s2 = inlined_call_operand.vmem [shape: f32[8,1], index: 2, kind: input, shape index: {}]
  %s3 = inlined_call_operand.hbm [shape: f32[1,1], index: 3, kind: output, shape index: {}]
  %s4 = sld [smem:[#allocation0]]
  $region34: #{tpu_custom_call.1} parent=0
    _
  %s6 = ssub.s32 1, %s4
  %s7 = scalar_select 0, %s6, %s4
  $region1: #{tpu_custom_call.1} parent=0
    #allocation3 [shape = 'u8[4096]{0}', space=vmem, size = 0x1000, scoped, tag = 'input window, operand 1, single buffered']
    #allocation4 [shape = 's32[1]{0}', space=sflag, size = 0x4, scoped, tag = 'scoped memory for tpu_custom_call.1']
    #allocation5 [shape = 's32[1]{0}', space=sflag, size = 0x4, scoped, tag = 'scoped memory for tpu_custom_call.1']
    #allocation6 [shape = 'u8[512]{0}', space=smem, size = 0x200, scoped, tag = 'output window, operand 0, single buffered']
    %8 = vsyncpa [#allocation4], 0
    %9 = vsyncpa [#allocation5], 0
    // Predicated region
    $region2: #{tpu_custom_call.1} parent=1 // pred_check
      _
    $region3: #{tpu_custom_call.1} parent=1 // pred_check_branch
      %11 = sbr.rel (0) target = $region5
    $region4: #{tpu_custom_call.1} parent=1 // pred_region
      _
    $region5: #{tpu_custom_call.1} parent=1 // pred_fallthru
      _
    // Predicated region
    $region6: #{tpu_custom_call.1} parent=1 // pred_check
      _
    $region7: #{tpu_custom_call.1} parent=1 // pred_check_branch
      %13 = sbr.rel (0) target = $region9
    $region8: #{tpu_custom_call.1} parent=1 // pred_region
      %15 = vsyncadd [#allocation4], 0
      %s17 = sshll.u32 %s1, 4
      %s18 = int_to_ptr.hbm [resolvable:$true] %s17
      %s19 = sshll.u32 [#allocation3], 4
      %s20 = int_to_ptr.vmem [resolvable:$true] %s19
      %22 = dma.hbm_to_vmem [thread:$0]  %s18, 128, %s20, [#allocation4]
    $region9: #{tpu_custom_call.1} parent=1 // pred_fallthru
      _
    // Predicated region
    $region10: #{tpu_custom_call.1} parent=1 // pred_check
      _
    $region11: #{tpu_custom_call.1} parent=1 // pred_check_branch
      %24 = sbr.rel (0) target = $region13
    $region12: #{tpu_custom_call.1} parent=1 // pred_region
      _
    $region13: #{tpu_custom_call.1} parent=1 // pred_fallthru
      _
    // Predicated region
    $region14: #{tpu_custom_call.1} parent=1 // pred_check
      _
    $region15: #{tpu_custom_call.1} parent=1 // pred_check_branch
      %26 = sbr.rel (0) target = $region17
    $region16: #{tpu_custom_call.1} parent=1 // pred_region
      %28 = dma.done [#allocation4], 128
    $region17: #{tpu_custom_call.1} parent=1 // pred_fallthru
      _
    %p29 = scmp.eq.s32.totalorder 0, 0
    // Predicated region
    $region18: #{tpu_custom_call.1} parent=1 // pred_check
      %p30 = pneg %p29
    $region19: #{tpu_custom_call.1} parent=1 // pred_check_branch
      %32 = sbr.rel (%p30) target = $region21
    $region20: #{tpu_custom_call.1} parent=1 // pred_region
      %vm33 = vcmask 7168
      %34 = vst.msk [vmem:[#allocation2] sm:$0xff] %vm33, 0.0
    $region21: #{tpu_custom_call.1} parent=1 // pred_fallthru
      _
    %v35 = vld [vmem:[%s0] sm:$0xff]
    %v36 = vld [vmem:[#allocation3] sm:$0xff]
    %v37 = vsub.f32 %v35, %v36
    %v38 = vadd.f32 %v37, 1e-06
    %v39 = vld [vmem:[#allocation2] sm:$0xff]
    %v40 = vmul.f32 %v38, %v38
    %vm41 = vcmask 261120
    %v42 = vsel %vm41, %v40, 0.0
    %43 = vadd.xlane.f32.xlu0 %v42
    %v44 = vpop.xlane.xlu0 %43
    %v45 = vadd.f32 %v39, %v44
    %vm46 = vcmask 7168
    %47 = vst.msk [vmem:[#allocation2] sm:$0xff] %vm46, %v45
    // Predicated region
    $region22: #{tpu_custom_call.1} parent=1 // pred_check
      %p48 = pneg %p29
    $region23: #{tpu_custom_call.1} parent=1 // pred_check_branch
      %50 = sbr.rel (%p48) target = $region25
    $region24: #{tpu_custom_call.1} parent=1 // pred_region
      %v51 = vld [vmem:[#allocation2] sm:$0xff]
      %v52 = vrsqrt.pop %v51
      %v53 = vmul.f32 %v52, %v51
      %v54 = vmul.f32 %v53, %v52
      %v55 = vmul.f32 0.5, %v54
      %v56 = vsub.f32 1.5, %v55
      %v57 = vmul.f32 %v52, %v56
      %v58 = vmul.f32 %v51, %v57
      %vm59 = vcmp.eq.f32.partialorder %v51, inf
      %v60 = vsel %vm59, %v51, %v58
      %vm61 = vcmp.eq.f32.partialorder %v51, 0.0
      %v62 = vand.u32 %v51, 2147483648
      %v63 = vsel %vm61, %v62, %v60
      %v64 = vld [vmem:[%s2] sm:$0xff]
      %v65 = vsub.f32 1.0, %v63
      %v66 = vmax.f32 %v65, 0.0
      %v67 = vsub.f32 1.0, %v64
      %v68 = vmul.f32 %v67, %v51
      %v69 = vmul.f32 %v66, %v66
      %v70 = vmul.f32 %v64, %v69
      %v71 = vadd.f32 %v68, %v70
      %s72 = smul.u32 0, 8
      %v73 = vlaneseq
      %v74 = vshrl.u32 %v73, 7
      %v75 = vstv %s72
      %v76 = vadd.s32 %v75, %v74
      %vm77 = vcmp.lt.s32.totalorder %v76, 8
      %v78 = vsel %vm77, %v71, 0.0
      %v79 = vsel %vm46, %v78, 0.0
      %80 = vadd.xlane.f32.xlu0 %v79
      %v81 = vpop.xlane.xlu0 %80
      %v82 = vrot.slane %v81, 4
      %v83 = vadd.f32 %v81, %v82
      %v84 = vrot.slane %v83, 2
      %v85 = vadd.f32 %v83, %v84
      %v86 = vrot.slane %v85, 1
      %v87 = vadd.f32 %v85, %v86
      %s88 = vtos %v87
      %s89 = scalar_lea.smem [#allocation6], 0
      %90 = sst [smem:[%s89]] %s88
    $region25: #{tpu_custom_call.1} parent=1 // pred_fallthru
      _
    // Predicated region
    $region26: #{tpu_custom_call.1} parent=1 // pred_check
      _
    $region27: #{tpu_custom_call.1} parent=1 // pred_check_branch
      %92 = sbr.rel (0) target = $region29
    $region28: #{tpu_custom_call.1} parent=1 // pred_region
      %94 = vsyncadd [#allocation5], 0
      %s96 = sshll.u32 %s3, 4
      %s97 = int_to_ptr.hbm [resolvable:$true] %s96
      %99 = dma.smem_to_hbm [#allocation6], 16, %s97, [#allocation5]
    $region29: #{tpu_custom_call.1} parent=1 // pred_fallthru
      _
    // Predicated region
    $region30: #{tpu_custom_call.1} parent=1 // pred_check
      _
    $region31: #{tpu_custom_call.1} parent=1 // pred_check_branch
      %101 = sbr.rel (0) target = $region33
    $region32: #{tpu_custom_call.1} parent=1 // pred_region
      %103 = dma.done [#allocation5], 16
    $region33: #{tpu_custom_call.1} parent=1 // pred_fallthru
      _
    %104 = sfence
    %105 = vsyncpa [#allocation4], 1
    %106 = vsyncpa [#allocation5], 1

</llo_original>
